<compile_context>
chip_gen: v7x
topology: tpu7x:2x2x1
jax: 0.10.0
libtpu: 0.0.40
codegen_flags: <defaults>
</compile_context>

<pallas_src>
import functools

import jax
import jax.numpy as jnp
import numpy as np
from jax.experimental import pallas as pl
from jax.experimental.pallas import tpu as pltpu

INV_GRID = 1.0 / 14.0     # reference module hardcodes /14.0 (independent of S)
C = 30                    # B*5 + 20 channels
_CELL_GRANULE = 8 * 128   # one (8 sublane x 128 lane) slab of cells


def _round_up(x, m):
    return -(-x // m) * m


def _chip_config():
    """Returns (max_tile_cells, n_core_splits, vmem_limit_bytes_or_None)."""
    try:
        kind = jax.devices()[0].device_kind.lower()
    except Exception:      # CPU / interpret fallback
        kind = ""
    if "v7" in kind:
        # 2 TCs/chip but only 64 MiB VMEM: modest tiles, split work across TCs.
        # TODO(synk): confirm the plain "parallel" hint actually shards the
        # leading axis across v7x's two TensorCores; use CORE_PARALLEL if not.
        return 16384, 2, None
    if "v6" in kind:
        # 1 TC, 128 MiB VMEM: big tiles, raise the scoped-VMEM limit.
        return 32768, 1, 64 << 20
    # v5e / older / unknown: 16K cells fits the 16 MiB default scoped VMEM.
    return 16384, 1, None


def _per_cell_terms(pred, tgt, l_coord, l_noobj):
    """Per-cell loss. pred/tgt: (30, Tb, 128) f32 channel-major, cells packed
    densely on sublanes+lanes. Returns (Tb, 128)."""
    conf_t0 = tgt[4]
    coo = conf_t0 > 0.0        # cell contains an object
    noo = conf_t0 == 0.0       # cell contains no object

    # --- no-object loss: confidence channels 4 and 9 -------------------------
    noo_sq = (pred[4] - tgt[4]) ** 2 + (pred[9] - tgt[9]) ** 2
    noo_term = jnp.where(noo, noo_sq, 0.0)

    # --- class loss: channels 10:30 of object cells ---------------------------
    cdiff = pred[10:30] - tgt[10:30]                       # (20, Tb, 128)
    class_term = jnp.where(coo, jnp.sum(cdiff * cdiff, axis=0), 0.0)

    # --- IoU of each predicted box with the cell's target box 0 ---------------
    tcx, tcy, tw, th = tgt[0], tgt[1], tgt[2], tgt[3]
    tx1 = tcx * INV_GRID - 0.5 * tw
    ty1 = tcy * INV_GRID - 0.5 * th
    tx2 = tcx * INV_GRID + 0.5 * tw
    ty2 = tcy * INV_GRID + 0.5 * th
    area_t = (tx2 - tx1) * (ty2 - ty1)

    def iou_vs_target0(pcx, pcy, pw, ph):
        px1 = pcx * INV_GRID - 0.5 * pw
        py1 = pcy * INV_GRID - 0.5 * ph
        px2 = pcx * INV_GRID + 0.5 * pw
        py2 = pcy * INV_GRID + 0.5 * ph
        iw = jnp.maximum(jnp.minimum(px2, tx2) - jnp.maximum(px1, tx1), 0.0)
        ih = jnp.maximum(jnp.minimum(py2, ty2) - jnp.maximum(py1, ty1), 0.0)
        inter = iw * ih
        area_p = (px2 - px1) * (py2 - py1)
        union = area_p + area_t - inter
        union = jnp.where(union > 0.0, union, 1.0)   # avoid 0/0 on padded cells
        # EUP approx reciprocal (free slot) + one Newton step -> ~f32-exact.
        inv_u = pl.reciprocal(union, approx=True)
        inv_u = inv_u * (2.0 - union * inv_u)
        return inter * inv_u

    iou0 = iou_vs_target0(pred[0], pred[1], pred[2], pred[3])
    iou1 = iou_vs_target0(pred[5], pred[6], pred[7], pred[8])
    sel1 = iou1 > iou0               # tie -> box 0 (matches torch.max first index)
    max_iou = jnp.maximum(iou0, iou1)

    def pick(a, b):                  # responsible box: box1 if sel1 else box0
        return jnp.where(sel1, b, a)

    # responsible predicted box / matching target box / other box's confidence
    r_px, r_py = pick(pred[0], pred[5]), pick(pred[1], pred[6])
    r_pw, r_ph = pick(pred[2], pred[7]), pick(pred[3], pred[8])
    r_pc = pick(pred[4], pred[9])
    r_tx, r_ty = pick(tgt[0], tgt[5]), pick(tgt[1], tgt[6])
    r_tw, r_th = pick(tgt[2], tgt[7]), pick(tgt[3], tgt[8])
    nr_pc = jnp.where(sel1, pred[4], pred[9])

    contain_term = jnp.where(coo, (r_pc - max_iou) ** 2, 0.0)

    # NOTE: sqrt of a negative predicted w/h produces NaN, exactly like
    # torch.sqrt in the reference.
    loc_sq = ((r_px - r_tx) ** 2 + (r_py - r_ty) ** 2
              + (jnp.sqrt(r_pw) - jnp.sqrt(r_tw)) ** 2
              + (jnp.sqrt(r_ph) - jnp.sqrt(r_th)) ** 2)
    loc_term = jnp.where(coo, loc_sq, 0.0)

    not_contain_term = jnp.where(coo, nr_pc * nr_pc, 0.0)

    return (l_coord * loc_term + 2.0 * contain_term + not_contain_term
            + l_noobj * noo_term + class_term)


def _yolo_loss_kernel(pred_ref, tgt_ref, out_ref, acc_ref, *,
                      l_coord, l_noobj, n_batch):
    step = pl.program_id(1)

    @pl.when(step == 0)
    def _init():
        acc_ref[...] = jnp.zeros_like(acc_ref)

    pred = pred_ref[...].astype(jnp.float32)   # (30, Tb, 128)
    tgt = tgt_ref[...].astype(jnp.float32)     # (30, Tb, 128)

    # lane+sublane-dense vector accumulation; no per-step cross-lane reduction
    acc_ref[...] += _per_cell_terms(pred, tgt, l_coord, l_noobj)   # (Tb, 128)

    @pl.when(step == pl.num_programs(1) - 1)
    def _finalize():
        total = jnp.sum(acc_ref[...], axis=1, keepdims=True)     # (Tb, 1) lanes
        total = jnp.sum(total, axis=0, keepdims=True)            # (1, 1)  sublanes
        out_ref[...] = (total * (1.0 / n_batch))[None, :, :]     # (1, 1, 1)


def yolo_loss(pred, target, *, l_coord=5.0, l_noobj=0.5, max_tile=None):
    """Pallas implementation of yoloLoss.forward. pred/target: (N, S, S, 30)."""
    n_batch = pred.shape[0]
    c = pred.shape[-1]
    p = pred.shape[0] * pred.shape[1] * pred.shape[2]

    chip_tile, n_split, vmem_limit = _chip_config()
    if max_tile is None:
        max_tile = chip_tile
    max_tile = max(_CELL_GRANULE, _round_up(int(max_tile), _CELL_GRANULE))
    if n_split > 1 and p <= 2 * _CELL_GRANULE:
        n_split = 1                       # tiny problems: skip the core split

    # Per-core tile sizing: every core gets real cells; padding is bounded by
    # n_split * 1024 cells (small P) or n_split * max_tile (huge P -> few %).
    per_core = -(-p // n_split)
    tile = min(max_tile, _round_up(per_core, _CELL_GRANULE))
    steps = -(-per_core // tile)
    p_pad = n_split * steps * tile
    tb = tile // 128                      # sublane-blocks per tile (multiple of 8)

    # Channel-major, sublane-dense cell slabs: (30, P_pad//128, 128).
    # Zero-padded cells contribute exactly zero (target conf 0 selects the
    # no-object term, (0-0)^2 + (0-0)^2 = 0), so no in-kernel masking needed.
    # TODO(synk): emit predictions channel-major upstream to drop this copy.
    def to_cm(x):
        x = x.reshape(p, c)
        if p_pad != p:
            x = jnp.pad(x, ((0, p_pad - p), (0, 0)))
        return x.T.reshape(c, p_pad // 128, 128)

    pred_cm = to_cm(pred)
    tgt_cm = to_cm(target)

    kernel = functools.partial(_yolo_loss_kernel, l_coord=float(l_coord),
                               l_noobj=float(l_noobj), n_batch=float(n_batch))

    out = pl.pallas_call(
        kernel,
        out_shape=jax.ShapeDtypeStruct((n_split, 1, 1), jnp.float32),  # per-core partials
        grid_spec=pltpu.PrefetchScalarGridSpec(
            num_scalar_prefetch=0,
            grid=(n_split, steps),
            in_specs=[
                pl.BlockSpec((c, tb, 128), lambda co, i: (0, co * steps + i, 0)),
                pl.BlockSpec((c, tb, 128), lambda co, i: (0, co * steps + i, 0)),
            ],
            out_specs=pl.BlockSpec((1, 1, 1), lambda co, i: (co, 0, 0)),
            scratch_shapes=[pltpu.VMEM((tb, 128), jnp.float32)],
        ),
        compiler_params=pltpu.CompilerParams(
            dimension_semantics=("parallel", "arbitrary"),
            vmem_limit_bytes=vmem_limit),
    )(pred_cm, tgt_cm)
    return jnp.sum(out)


def yolo_loss_ref(pred, target, l_coord=5.0, l_noobj=0.5):
    """Pure-JAX reference mirroring the PyTorch module (row-major layout)."""
    n = pred.shape[0]
    c = pred.shape[-1]
    p = pred.reshape(-1, c).astype(jnp.float32)
    t = target.reshape(-1, c).astype(jnp.float32)
    conf = t[:, 4]
    coo = conf > 0.0
    noo = conf == 0.0

    noo_loss = jnp.sum(jnp.where(
        noo, (p[:, 4] - t[:, 4]) ** 2 + (p[:, 9] - t[:, 9]) ** 2, 0.0))
    class_loss = jnp.sum(jnp.where(
        coo, jnp.sum((p[:, 10:] - t[:, 10:]) ** 2, axis=-1), 0.0))

    def to_xyxy(b):
        xy = b[:, :2] / 14.0
        wh = b[:, 2:4]
        return jnp.concatenate([xy - 0.5 * wh, xy + 0.5 * wh], axis=-1)

    def iou(a, b):
        lt = jnp.maximum(a[:, :2], b[:, :2])
        rb = jnp.minimum(a[:, 2:], b[:, 2:])
        wh = jnp.maximum(rb - lt, 0.0)
        inter = wh[:, 0] * wh[:, 1]
        area_a = (a[:, 2] - a[:, 0]) * (a[:, 3] - a[:, 1])
        area_b = (b[:, 2] - b[:, 0]) * (b[:, 3] - b[:, 1])
        union = area_a + area_b - inter
        return inter / jnp.where(union > 0.0, union, 1.0)

    iou0 = iou(to_xyxy(p[:, 0:5]), to_xyxy(t[:, 0:5]))
    iou1 = iou(to_xyxy(p[:, 5:10]), to_xyxy(t[:, 0:5]))
    sel1 = iou1 > iou0
    max_iou = jnp.maximum(iou0, iou1)

    rp = jnp.where(sel1[:, None], p[:, 5:10], p[:, 0:5])
    rt = jnp.where(sel1[:, None], t[:, 5:10], t[:, 0:5])
    nr_conf = jnp.where(sel1, p[:, 4], p[:, 9])

    contain_loss = jnp.sum(jnp.where(coo, (rp[:, 4] - max_iou) ** 2, 0.0))
    loc_loss = jnp.sum(jnp.where(
        coo,
        (rp[:, 0] - rt[:, 0]) ** 2 + (rp[:, 1] - rt[:, 1]) ** 2
        + (jnp.sqrt(rp[:, 2]) - jnp.sqrt(rt[:, 2])) ** 2
        + (jnp.sqrt(rp[:, 3]) - jnp.sqrt(rt[:, 3])) ** 2,
        0.0))
    not_contain_loss = jnp.sum(jnp.where(coo, nr_conf ** 2, 0.0))

    return (l_coord * loc_loss + 2.0 * contain_loss + not_contain_loss
            + l_noobj * noo_loss + class_loss) / float(n)


if __name__ == "__main__":
    key = jax.random.PRNGKey(0)
    k1, k2, k3 = jax.random.split(key, 3)

    # module implies S=14 (hardcoded /14.0), B=2 -> 30 channels; small batch
    N, S = 2, 14
    pred = jax.random.uniform(k1, (N, S, S, C), jnp.float32, minval=0.05, maxval=0.95)
    target = jax.random.uniform(k2, (N, S, S, C), jnp.float32, minval=0.05, maxval=0.95)
    # ~20% of cells contain an object (target confidence > 0), rest set to 0
    obj = jax.random.uniform(k3, (N, S, S)) < 0.2
    target = target.at[..., 4].set(jnp.where(obj, target[..., 4], 0.0))

    loss = jax.block_until_ready(yolo_loss(pred, target, l_coord=5.0, l_noobj=0.5))
    ref = jax.block_until_ready(yolo_loss_ref(pred, target, 5.0, 0.5))
    # Newton-refined approx reciprocal keeps IoU ~f32-exact; tolerance has margin.
    np.testing.assert_allclose(np.asarray(loss), np.asarray(ref), rtol=1e-4, atol=1e-3)

    print("KERNEL_OK")
</pallas_src>

<mosaic_0001>
module attributes {stable_mosaic.version = 11 : i64} {
  func.func @_yolo_loss_kernel(%arg0: i32, %arg1: i32, %arg2: memref<30x8x128xf32, #tpu.memory_space<vmem>>, %arg3: memref<30x8x128xf32, #tpu.memory_space<vmem>>, %arg4: memref<1x1x1xf32, #tpu.memory_space<vmem>>, %arg5: memref<8x128xf32, #tpu.memory_space<vmem>>) attributes {dimension_semantics = [#tpu.dimension_semantics<parallel>, #tpu.dimension_semantics<arbitrary>], iteration_bounds = array<i64: 1, 1>, scalar_prefetch = 0 : i64, scratch_operands = 1 : i64, tpu.core_type = #tpu.core_type<tc>, window_params = [{transform_indices = @transform_0, window_bounds = array<i64: 30, 8, 128>}, {transform_indices = @transform_1, window_bounds = array<i64: 30, 8, 128>}, {transform_indices = @transform_2, window_bounds = array<i64: 1, 1, 1>}]} {
    %c0_i32 = arith.constant 0 : i32
    %0 = arith.cmpi eq, %arg1, %c0_i32 : i32
    %1 = arith.extui %0 : i1 to i32
    %c0_i32_0 = arith.constant 0 : i32
    %2 = arith.cmpi ne, %1, %c0_i32_0 : i32
    scf.if %2 {
      %cst_56 = arith.constant 0.000000e+00 : f32
      %264 = vector.broadcast %cst_56 : f32 to vector<8x128xf32>
      %c0_57 = arith.constant 0 : index
      %c0_58 = arith.constant 0 : index
      %265 = vector.load %arg5[%c0_57, %c0_58] : memref<8x128xf32, #tpu.memory_space<vmem>>, vector<8x128xf32>
      tpu.vector_store %arg5[%c0_57, %c0_58], %264 {strides = array<i32>} : memref<8x128xf32, #tpu.memory_space<vmem>>, vector<8x128xf32>,
    } else {
    }
    %c0 = arith.constant 0 : index
    %c0_1 = arith.constant 0 : index
    %c0_2 = arith.constant 0 : index
    %3 = vector.load %arg2[%c0, %c0_1, %c0_2] : memref<30x8x128xf32, #tpu.memory_space<vmem>>, vector<30x8x128xf32>
    %c0_3 = arith.constant 0 : index
    %c0_4 = arith.constant 0 : index
    %c0_5 = arith.constant 0 : index
    %4 = vector.load %arg3[%c0_3, %c0_4, %c0_5] : memref<30x8x128xf32, #tpu.memory_space<vmem>>, vector<30x8x128xf32>
    %c0_6 = arith.constant 0 : index
    %c0_7 = arith.constant 0 : index
    %5 = vector.load %arg5[%c0_6, %c0_7] : memref<8x128xf32, #tpu.memory_space<vmem>>, vector<8x128xf32>
    %6 = vector.extract_strided_slice %4 {offsets = [4, 0, 0], sizes = [1, 8, 128], strides = [1, 1, 1]} : vector<30x8x128xf32> to vector<1x8x128xf32>
    %7 = vector.shape_cast %6 : vector<1x8x128xf32> to vector<8x128xf32>
    %cst = arith.constant 0.000000e+00 : f32
    %8 = vector.broadcast %cst : f32 to vector<8x128xf32>
    %9 = arith.cmpf ogt, %7, %8 : vector<8x128xf32>
    %cst_8 = arith.constant 0.000000e+00 : f32
    %10 = vector.broadcast %cst_8 : f32 to vector<8x128xf32>
    %11 = arith.cmpf oeq, %7, %10 : vector<8x128xf32>
    %12 = vector.extract_strided_slice %3 {offsets = [4, 0, 0], sizes = [1, 8, 128], strides = [1, 1, 1]} : vector<30x8x128xf32> to vector<1x8x128xf32>
    %13 = vector.shape_cast %12 : vector<1x8x128xf32> to vector<8x128xf32>
    %14 = vector.extract_strided_slice %4 {offsets = [4, 0, 0], sizes = [1, 8, 128], strides = [1, 1, 1]} : vector<30x8x128xf32> to vector<1x8x128xf32>
    %15 = vector.shape_cast %14 : vector<1x8x128xf32> to vector<8x128xf32>
    %16 = arith.subf %13, %15 : vector<8x128xf32>
    %17 = arith.mulf %16, %16 : vector<8x128xf32>
    %18 = vector.extract_strided_slice %3 {offsets = [9, 0, 0], sizes = [1, 8, 128], strides = [1, 1, 1]} : vector<30x8x128xf32> to vector<1x8x128xf32>
    %19 = vector.shape_cast %18 : vector<1x8x128xf32> to vector<8x128xf32>
    %20 = vector.extract_strided_slice %4 {offsets = [9, 0, 0], sizes = [1, 8, 128], strides = [1, 1, 1]} : vector<30x8x128xf32> to vector<1x8x128xf32>
    %21 = vector.shape_cast %20 : vector<1x8x128xf32> to vector<8x128xf32>
    %22 = arith.subf %19, %21 : vector<8x128xf32>
    %23 = arith.mulf %22, %22 : vector<8x128xf32>
    %24 = arith.addf %17, %23 : vector<8x128xf32>
    %cst_9 = arith.constant 0.000000e+00 : f32
    %25 = vector.broadcast %cst_9 : f32 to vector<8x128xf32>
    %26 = arith.select %11, %24, %25 : vector<8x128xi1>, vector<8x128xf32>
    %27 = vector.extract_strided_slice %3 {offsets = [10, 0, 0], sizes = [20, 8, 128], strides = [1, 1, 1]} : vector<30x8x128xf32> to vector<20x8x128xf32>
    %28 = vector.extract_strided_slice %4 {offsets = [10, 0, 0], sizes = [20, 8, 128], strides = [1, 1, 1]} : vector<30x8x128xf32> to vector<20x8x128xf32>
    %29 = arith.subf %27, %28 : vector<20x8x128xf32>
    %30 = arith.mulf %29, %29 : vector<20x8x128xf32>
    %cst_10 = arith.constant dense<0.000000e+00> : vector<8x128xf32>
    %31 = vector.multi_reduction <add>, %30, %cst_10 [0] : vector<20x8x128xf32> to vector<8x128xf32>
    %cst_11 = arith.constant 0.000000e+00 : f32
    %32 = vector.broadcast %cst_11 : f32 to vector<8x128xf32>
    %33 = arith.select %9, %31, %32 : vector<8x128xi1>, vector<8x128xf32>
    %34 = vector.extract_strided_slice %4 {offsets = [0, 0, 0], sizes = [1, 8, 128], strides = [1, 1, 1]} : vector<30x8x128xf32> to vector<1x8x128xf32>
    %35 = vector.shape_cast %34 : vector<1x8x128xf32> to vector<8x128xf32>
    %36 = vector.extract_strided_slice %4 {offsets = [1, 0, 0], sizes = [1, 8, 128], strides = [1, 1, 1]} : vector<30x8x128xf32> to vector<1x8x128xf32>
    %37 = vector.shape_cast %36 : vector<1x8x128xf32> to vector<8x128xf32>
    %38 = vector.extract_strided_slice %4 {offsets = [2, 0, 0], sizes = [1, 8, 128], strides = [1, 1, 1]} : vector<30x8x128xf32> to vector<1x8x128xf32>
    %39 = vector.shape_cast %38 : vector<1x8x128xf32> to vector<8x128xf32>
    %40 = vector.extract_strided_slice %4 {offsets = [3, 0, 0], sizes = [1, 8, 128], strides = [1, 1, 1]} : vector<30x8x128xf32> to vector<1x8x128xf32>
    %41 = vector.shape_cast %40 : vector<1x8x128xf32> to vector<8x128xf32>
    %cst_12 = arith.constant 0.0714285746 : f32
    %42 = vector.broadcast %cst_12 : f32 to vector<8x128xf32>
    %43 = arith.mulf %35, %42 : vector<8x128xf32>
    %cst_13 = arith.constant 5.000000e-01 : f32
    %44 = vector.broadcast %cst_13 : f32 to vector<8x128xf32>
    %45 = arith.mulf %44, %39 : vector<8x128xf32>
    %46 = arith.subf %43, %45 : vector<8x128xf32>
    %cst_14 = arith.constant 0.0714285746 : f32
    %47 = vector.broadcast %cst_14 : f32 to vector<8x128xf32>
    %48 = arith.mulf %37, %47 : vector<8x128xf32>
    %cst_15 = arith.constant 5.000000e-01 : f32
    %49 = vector.broadcast %cst_15 : f32 to vector<8x128xf32>
    %50 = arith.mulf %49, %41 : vector<8x128xf32>
    %51 = arith.subf %48, %50 : vector<8x128xf32>
    %cst_16 = arith.constant 0.0714285746 : f32
    %52 = vector.broadcast %cst_16 : f32 to vector<8x128xf32>
    %53 = arith.mulf %35, %52 : vector<8x128xf32>
    %cst_17 = arith.constant 5.000000e-01 : f32
    %54 = vector.broadcast %cst_17 : f32 to vector<8x128xf32>
    %55 = arith.mulf %54, %39 : vector<8x128xf32>
    %56 = arith.addf %53, %55 : vector<8x128xf32>
    %cst_18 = arith.constant 0.0714285746 : f32
    %57 = vector.broadcast %cst_18 : f32 to vector<8x128xf32>
    %58 = arith.mulf %37, %57 : vector<8x128xf32>
    %cst_19 = arith.constant 5.000000e-01 : f32
    %59 = vector.broadcast %cst_19 : f32 to vector<8x128xf32>
    %60 = arith.mulf %59, %41 : vector<8x128xf32>
    %61 = arith.addf %58, %60 : vector<8x128xf32>
    %62 = arith.subf %56, %46 : vector<8x128xf32>
    %63 = arith.subf %61, %51 : vector<8x128xf32>
    %64 = arith.mulf %62, %63 : vector<8x128xf32>
    %65 = vector.extract_strided_slice %3 {offsets = [0, 0, 0], sizes = [1, 8, 128], strides = [1, 1, 1]} : vector<30x8x128xf32> to vector<1x8x128xf32>
    %66 = vector.shape_cast %65 : vector<1x8x128xf32> to vector<8x128xf32>
    %67 = vector.extract_strided_slice %3 {offsets = [1, 0, 0], sizes = [1, 8, 128], strides = [1, 1, 1]} : vector<30x8x128xf32> to vector<1x8x128xf32>
    %68 = vector.shape_cast %67 : vector<1x8x128xf32> to vector<8x128xf32>
    %69 = vector.extract_strided_slice %3 {offsets = [2, 0, 0], sizes = [1, 8, 128], strides = [1, 1, 1]} : vector<30x8x128xf32> to vector<1x8x128xf32>
    %70 = vector.shape_cast %69 : vector<1x8x128xf32> to vector<8x128xf32>
    %71 = vector.extract_strided_slice %3 {offsets = [3, 0, 0], sizes = [1, 8, 128], strides = [1, 1, 1]} : vector<30x8x128xf32> to vector<1x8x128xf32>
    %72 = vector.shape_cast %71 : vector<1x8x128xf32> to vector<8x128xf32>
    %cst_20 = arith.constant 0.0714285746 : f32
    %73 = vector.broadcast %cst_20 : f32 to vector<8x128xf32>
    %74 = arith.mulf %66, %73 : vector<8x128xf32>
    %cst_21 = arith.constant 5.000000e-01 : f32
    %75 = vector.broadcast %cst_21 : f32 to vector<8x128xf32>
    %76 = arith.mulf %75, %70 : vector<8x128xf32>
    %77 = arith.subf %74, %76 : vector<8x128xf32>
    %cst_22 = arith.constant 0.0714285746 : f32
    %78 = vector.broadcast %cst_22 : f32 to vector<8x128xf32>
    %79 = arith.mulf %68, %78 : vector<8x128xf32>
    %cst_23 = arith.constant 5.000000e-01 : f32
    %80 = vector.broadcast %cst_23 : f32 to vector<8x128xf32>
    %81 = arith.mulf %80, %72 : vector<8x128xf32>
    %82 = arith.subf %79, %81 : vector<8x128xf32>
    %cst_24 = arith.constant 0.0714285746 : f32
    %83 = vector.broadcast %cst_24 : f32 to vector<8x128xf32>
    %84 = arith.mulf %66, %83 : vector<8x128xf32>
    %cst_25 = arith.constant 5.000000e-01 : f32
    %85 = vector.broadcast %cst_25 : f32 to vector<8x128xf32>
    %86 = arith.mulf %85, %70 : vector<8x128xf32>
    %87 = arith.addf %84, %86 : vector<8x128xf32>
    %cst_26 = arith.constant 0.0714285746 : f32
    %88 = vector.broadcast %cst_26 : f32 to vector<8x128xf32>
    %89 = arith.mulf %68, %88 : vector<8x128xf32>
    %cst_27 = arith.constant 5.000000e-01 : f32
    %90 = vector.broadcast %cst_27 : f32 to vector<8x128xf32>
    %91 = arith.mulf %90, %72 : vector<8x128xf32>
    %92 = arith.addf %89, %91 : vector<8x128xf32>
    %93 = arith.minimumf %87, %56 : vector<8x128xf32>
    %94 = arith.maximumf %77, %46 : vector<8x128xf32>
    %95 = arith.subf %93, %94 : vector<8x128xf32>
    %cst_28 = arith.constant 0.000000e+00 : f32
    %96 = vector.broadcast %cst_28 : f32 to vector<8x128xf32>
    %97 = arith.maximumf %95, %96 : vector<8x128xf32>
    %98 = arith.minimumf %92, %61 : vector<8x128xf32>
    %99 = arith.maximumf %82, %51 : vector<8x128xf32>
    %100 = arith.subf %98, %99 : vector<8x128xf32>
    %cst_29 = arith.constant 0.000000e+00 : f32
    %101 = vector.broadcast %cst_29 : f32 to vector<8x128xf32>
    %102 = arith.maximumf %100, %101 : vector<8x128xf32>
    %103 = arith.mulf %97, %102 : vector<8x128xf32>
    %104 = arith.subf %87, %77 : vector<8x128xf32>
    %105 = arith.subf %92, %82 : vector<8x128xf32>
    %106 = arith.mulf %104, %105 : vector<8x128xf32>
    %107 = arith.addf %106, %64 : vector<8x128xf32>
    %108 = arith.subf %107, %103 : vector<8x128xf32>
    %cst_30 = arith.constant 0.000000e+00 : f32
    %109 = vector.broadcast %cst_30 : f32 to vector<8x128xf32>
    %110 = arith.cmpf ogt, %108, %109 : vector<8x128xf32>
    %cst_31 = arith.constant 1.000000e+00 : f32
    %111 = vector.broadcast %cst_31 : f32 to vector<8x128xf32>
    %112 = arith.select %110, %108, %111 : vector<8x128xi1>, vector<8x128xf32>
    %113 = tpu.reciprocal %112 {approx = true} : vector<8x128xf32> -> vector<8x128xf32>
    %114 = arith.mulf %112, %113 : vector<8x128xf32>
    %cst_32 = arith.constant 2.000000e+00 : f32
    %115 = vector.broadcast %cst_32 : f32 to vector<8x128xf32>
    %116 = arith.subf %115, %114 : vector<8x128xf32>
    %117 = arith.mulf %113, %116 : vector<8x128xf32>
    %118 = arith.mulf %103, %117 : vector<8x128xf32>
    %119 = vector.extract_strided_slice %3 {offsets = [5, 0, 0], sizes = [1, 8, 128], strides = [1, 1, 1]} : vector<30x8x128xf32> to vector<1x8x128xf32>
    %120 = vector.shape_cast %119 : vector<1x8x128xf32> to vector<8x128xf32>
    %121 = vector.extract_strided_slice %3 {offsets = [6, 0, 0], sizes = [1, 8, 128], strides = [1, 1, 1]} : vector<30x8x128xf32> to vector<1x8x128xf32>
    %122 = vector.shape_cast %121 : vector<1x8x128xf32> to vector<8x128xf32>
    %123 = vector.extract_strided_slice %3 {offsets = [7, 0, 0], sizes = [1, 8, 128], strides = [1, 1, 1]} : vector<30x8x128xf32> to vector<1x8x128xf32>
    %124 = vector.shape_cast %123 : vector<1x8x128xf32> to vector<8x128xf32>
    %125 = vector.extract_strided_slice %3 {offsets = [8, 0, 0], sizes = [1, 8, 128], strides = [1, 1, 1]} : vector<30x8x128xf32> to vector<1x8x128xf32>
    %126 = vector.shape_cast %125 : vector<1x8x128xf32> to vector<8x128xf32>
    %cst_33 = arith.constant 0.0714285746 : f32
    %127 = vector.broadcast %cst_33 : f32 to vector<8x128xf32>
    %128 = arith.mulf %120, %127 : vector<8x128xf32>
    %cst_34 = arith.constant 5.000000e-01 : f32
    %129 = vector.broadcast %cst_34 : f32 to vector<8x128xf32>
    %130 = arith.mulf %129, %124 : vector<8x128xf32>
    %131 = arith.subf %128, %130 : vector<8x128xf32>
    %cst_35 = arith.constant 0.0714285746 : f32
    %132 = vector.broadcast %cst_35 : f32 to vector<8x128xf32>
    %133 = arith.mulf %122, %132 : vector<8x128xf32>
    %cst_36 = arith.constant 5.000000e-01 : f32
    %134 = vector.broadcast %cst_36 : f32 to vector<8x128xf32>
    %135 = arith.mulf %134, %126 : vector<8x128xf32>
    %136 = arith.subf %133, %135 : vector<8x128xf32>
    %cst_37 = arith.constant 0.0714285746 : f32
    %137 = vector.broadcast %cst_37 : f32 to vector<8x128xf32>
    %138 = arith.mulf %120, %137 : vector<8x128xf32>
    %cst_38 = arith.constant 5.000000e-01 : f32
    %139 = vector.broadcast %cst_38 : f32 to vector<8x128xf32>
    %140 = arith.mulf %139, %124 : vector<8x128xf32>
    %141 = arith.addf %138, %140 : vector<8x128xf32>
    %cst_39 = arith.constant 0.0714285746 : f32
    %142 = vector.broadcast %cst_39 : f32 to vector<8x128xf32>
    %143 = arith.mulf %122, %142 : vector<8x128xf32>
    %cst_40 = arith.constant 5.000000e-01 : f32
    %144 = vector.broadcast %cst_40 : f32 to vector<8x128xf32>
    %145 = arith.mulf %144, %126 : vector<8x128xf32>
    %146 = arith.addf %143, %145 : vector<8x128xf32>
    %147 = arith.minimumf %141, %56 : vector<8x128xf32>
    %148 = arith.maximumf %131, %46 : vector<8x128xf32>
    %149 = arith.subf %147, %148 : vector<8x128xf32>
    %cst_41 = arith.constant 0.000000e+00 : f32
    %150 = vector.broadcast %cst_41 : f32 to vector<8x128xf32>
    %151 = arith.maximumf %149, %150 : vector<8x128xf32>
    %152 = arith.minimumf %146, %61 : vector<8x128xf32>
    %153 = arith.maximumf %136, %51 : vector<8x128xf32>
    %154 = arith.subf %152, %153 : vector<8x128xf32>
    %cst_42 = arith.constant 0.000000e+00 : f32
    %155 = vector.broadcast %cst_42 : f32 to vector<8x128xf32>
    %156 = arith.maximumf %154, %155 : vector<8x128xf32>
    %157 = arith.mulf %151, %156 : vector<8x128xf32>
    %158 = arith.subf %141, %131 : vector<8x128xf32>
    %159 = arith.subf %146, %136 : vector<8x128xf32>
    %160 = arith.mulf %158, %159 : vector<8x128xf32>
    %161 = arith.addf %160, %64 : vector<8x128xf32>
    %162 = arith.subf %161, %157 : vector<8x128xf32>
    %cst_43 = arith.constant 0.000000e+00 : f32
    %163 = vector.broadcast %cst_43 : f32 to vector<8x128xf32>
    %164 = arith.cmpf ogt, %162, %163 : vector<8x128xf32>
    %cst_44 = arith.constant 1.000000e+00 : f32
    %165 = vector.broadcast %cst_44 : f32 to vector<8x128xf32>
    %166 = arith.select %164, %162, %165 : vector<8x128xi1>, vector<8x128xf32>
    %167 = tpu.reciprocal %166 {approx = true} : vector<8x128xf32> -> vector<8x128xf32>
    %168 = arith.mulf %166, %167 : vector<8x128xf32>
    %cst_45 = arith.constant 2.000000e+00 : f32
    %169 = vector.broadcast %cst_45 : f32 to vector<8x128xf32>
    %170 = arith.subf %169, %168 : vector<8x128xf32>
    %171 = arith.mulf %167, %170 : vector<8x128xf32>
    %172 = arith.mulf %157, %171 : vector<8x128xf32>
    %173 = arith.cmpf ogt, %172, %118 : vector<8x128xf32>
    %174 = arith.maximumf %118, %172 : vector<8x128xf32>
    %175 = vector.extract_strided_slice %3 {offsets = [0, 0, 0], sizes = [1, 8, 128], strides = [1, 1, 1]} : vector<30x8x128xf32> to vector<1x8x128xf32>
    %176 = vector.shape_cast %175 : vector<1x8x128xf32> to vector<8x128xf32>
    %177 = vector.extract_strided_slice %3 {offsets = [5, 0, 0], sizes = [1, 8, 128], strides = [1, 1, 1]} : vector<30x8x128xf32> to vector<1x8x128xf32>
    %178 = vector.shape_cast %177 : vector<1x8x128xf32> to vector<8x128xf32>
    %179 = arith.select %173, %178, %176 : vector<8x128xi1>, vector<8x128xf32>
    %180 = vector.extract_strided_slice %3 {offsets = [1, 0, 0], sizes = [1, 8, 128], strides = [1, 1, 1]} : vector<30x8x128xf32> to vector<1x8x128xf32>
    %181 = vector.shape_cast %180 : vector<1x8x128xf32> to vector<8x128xf32>
    %182 = vector.extract_strided_slice %3 {offsets = [6, 0, 0], sizes = [1, 8, 128], strides = [1, 1, 1]} : vector<30x8x128xf32> to vector<1x8x128xf32>
    %183 = vector.shape_cast %182 : vector<1x8x128xf32> to vector<8x128xf32>
    %184 = arith.select %173, %183, %181 : vector<8x128xi1>, vector<8x128xf32>
    %185 = vector.extract_strided_slice %3 {offsets = [2, 0, 0], sizes = [1, 8, 128], strides = [1, 1, 1]} : vector<30x8x128xf32> to vector<1x8x128xf32>
    %186 = vector.shape_cast %185 : vector<1x8x128xf32> to vector<8x128xf32>
    %187 = vector.extract_strided_slice %3 {offsets = [7, 0, 0], sizes = [1, 8, 128], strides = [1, 1, 1]} : vector<30x8x128xf32> to vector<1x8x128xf32>
    %188 = vector.shape_cast %187 : vector<1x8x128xf32> to vector<8x128xf32>
    %189 = arith.select %173, %188, %186 : vector<8x128xi1>, vector<8x128xf32>
    %190 = vector.extract_strided_slice %3 {offsets = [3, 0, 0], sizes = [1, 8, 128], strides = [1, 1, 1]} : vector<30x8x128xf32> to vector<1x8x128xf32>
    %191 = vector.shape_cast %190 : vector<1x8x128xf32> to vector<8x128xf32>
    %192 = vector.extract_strided_slice %3 {offsets = [8, 0, 0], sizes = [1, 8, 128], strides = [1, 1, 1]} : vector<30x8x128xf32> to vector<1x8x128xf32>
    %193 = vector.shape_cast %192 : vector<1x8x128xf32> to vector<8x128xf32>
    %194 = arith.select %173, %193, %191 : vector<8x128xi1>, vector<8x128xf32>
    %195 = vector.extract_strided_slice %3 {offsets = [4, 0, 0], sizes = [1, 8, 128], strides = [1, 1, 1]} : vector<30x8x128xf32> to vector<1x8x128xf32>
    %196 = vector.shape_cast %195 : vector<1x8x128xf32> to vector<8x128xf32>
    %197 = vector.extract_strided_slice %3 {offsets = [9, 0, 0], sizes = [1, 8, 128], strides = [1, 1, 1]} : vector<30x8x128xf32> to vector<1x8x128xf32>
    %198 = vector.shape_cast %197 : vector<1x8x128xf32> to vector<8x128xf32>
    %199 = arith.select %173, %198, %196 : vector<8x128xi1>, vector<8x128xf32>
    %200 = vector.extract_strided_slice %4 {offsets = [0, 0, 0], sizes = [1, 8, 128], strides = [1, 1, 1]} : vector<30x8x128xf32> to vector<1x8x128xf32>
    %201 = vector.shape_cast %200 : vector<1x8x128xf32> to vector<8x128xf32>
    %202 = vector.extract_strided_slice %4 {offsets = [5, 0, 0], sizes = [1, 8, 128], strides = [1, 1, 1]} : vector<30x8x128xf32> to vector<1x8x128xf32>
    %203 = vector.shape_cast %202 : vector<1x8x128xf32> to vector<8x128xf32>
    %204 = arith.select %173, %203, %201 : vector<8x128xi1>, vector<8x128xf32>
    %205 = vector.extract_strided_slice %4 {offsets = [1, 0, 0], sizes = [1, 8, 128], strides = [1, 1, 1]} : vector<30x8x128xf32> to vector<1x8x128xf32>
    %206 = vector.shape_cast %205 : vector<1x8x128xf32> to vector<8x128xf32>
    %207 = vector.extract_strided_slice %4 {offsets = [6, 0, 0], sizes = [1, 8, 128], strides = [1, 1, 1]} : vector<30x8x128xf32> to vector<1x8x128xf32>
    %208 = vector.shape_cast %207 : vector<1x8x128xf32> to vector<8x128xf32>
    %209 = arith.select %173, %208, %206 : vector<8x128xi1>, vector<8x128xf32>
    %210 = vector.extract_strided_slice %4 {offsets = [2, 0, 0], sizes = [1, 8, 128], strides = [1, 1, 1]} : vector<30x8x128xf32> to vector<1x8x128xf32>
    %211 = vector.shape_cast %210 : vector<1x8x128xf32> to vector<8x128xf32>
    %212 = vector.extract_strided_slice %4 {offsets = [7, 0, 0], sizes = [1, 8, 128], strides = [1, 1, 1]} : vector<30x8x128xf32> to vector<1x8x128xf32>
    %213 = vector.shape_cast %212 : vector<1x8x128xf32> to vector<8x128xf32>
    %214 = arith.select %173, %213, %211 : vector<8x128xi1>, vector<8x128xf32>
    %215 = vector.extract_strided_slice %4 {offsets = [3, 0, 0], sizes = [1, 8, 128], strides = [1, 1, 1]} : vector<30x8x128xf32> to vector<1x8x128xf32>
    %216 = vector.shape_cast %215 : vector<1x8x128xf32> to vector<8x128xf32>
    %217 = vector.extract_strided_slice %4 {offsets = [8, 0, 0], sizes = [1, 8, 128], strides = [1, 1, 1]} : vector<30x8x128xf32> to vector<1x8x128xf32>
    %218 = vector.shape_cast %217 : vector<1x8x128xf32> to vector<8x128xf32>
    %219 = arith.select %173, %218, %216 : vector<8x128xi1>, vector<8x128xf32>
    %220 = vector.extract_strided_slice %3 {offsets = [4, 0, 0], sizes = [1, 8, 128], strides = [1, 1, 1]} : vector<30x8x128xf32> to vector<1x8x128xf32>
    %221 = vector.shape_cast %220 : vector<1x8x128xf32> to vector<8x128xf32>
    %222 = vector.extract_strided_slice %3 {offsets = [9, 0, 0], sizes = [1, 8, 128], strides = [1, 1, 1]} : vector<30x8x128xf32> to vector<1x8x128xf32>
    %223 = vector.shape_cast %222 : vector<1x8x128xf32> to vector<8x128xf32>
    %224 = arith.select %173, %221, %223 : vector<8x128xi1>, vector<8x128xf32>
    %225 = arith.subf %199, %174 : vector<8x128xf32>
    %226 = arith.mulf %225, %225 : vector<8x128xf32>
    %cst_46 = arith.constant 0.000000e+00 : f32
    %227 = vector.broadcast %cst_46 : f32 to vector<8x128xf32>
    %228 = arith.select %9, %226, %227 : vector<8x128xi1>, vector<8x128xf32>
    %229 = arith.subf %179, %204 : vector<8x128xf32>
    %230 = arith.mulf %229, %229 : vector<8x128xf32>
    %231 = arith.subf %184, %209 : vector<8x128xf32>
    %232 = arith.mulf %231, %231 : vector<8x128xf32>
    %233 = arith.addf %230, %232 : vector<8x128xf32>
    %234 = math.sqrt %189 : vector<8x128xf32>
    %235 = math.sqrt %214 : vector<8x128xf32>
    %236 = arith.subf %234, %235 : vector<8x128xf32>
    %237 = arith.mulf %236, %236 : vector<8x128xf32>
    %238 = arith.addf %233, %237 : vector<8x128xf32>
    %239 = math.sqrt %194 : vector<8x128xf32>
    %240 = math.sqrt %219 : vector<8x128xf32>
    %241 = arith.subf %239, %240 : vector<8x128xf32>
    %242 = arith.mulf %241, %241 : vector<8x128xf32>
    %243 = arith.addf %238, %242 : vector<8x128xf32>
    %cst_47 = arith.constant 0.000000e+00 : f32
    %244 = vector.broadcast %cst_47 : f32 to vector<8x128xf32>
    %245 = arith.select %9, %243, %244 : vector<8x128xi1>, vector<8x128xf32>
    %246 = arith.mulf %224, %224 : vector<8x128xf32>
    %cst_48 = arith.constant 0.000000e+00 : f32
    %247 = vector.broadcast %cst_48 : f32 to vector<8x128xf32>
    %248 = arith.select %9, %246, %247 : vector<8x128xi1>, vector<8x128xf32>
    %cst_49 = arith.constant 5.000000e+00 : f32
    %249 = vector.broadcast %cst_49 : f32 to vector<8x128xf32>
    %250 = arith.mulf %249, %245 : vector<8x128xf32>
    %cst_50 = arith.constant 2.000000e+00 : f32
    %251 = vector.broadcast %cst_50 : f32 to vector<8x128xf32>
    %252 = arith.mulf %251, %228 : vector<8x128xf32>
    %253 = arith.addf %250, %252 : vector<8x128xf32>
    %254 = arith.addf %253, %248 : vector<8x128xf32>
    %cst_51 = arith.constant 5.000000e-01 : f32
    %255 = vector.broadcast %cst_51 : f32 to vector<8x128xf32>
    %256 = arith.mulf %255, %26 : vector<8x128xf32>
    %257 = arith.addf %254, %256 : vector<8x128xf32>
    %258 = arith.addf %257, %33 : vector<8x128xf32>
    %259 = arith.addf %5, %258 : vector<8x128xf32>
    %c0_52 = arith.constant 0 : index
    %c0_53 = arith.constant 0 : index
    %260 = vector.load %arg5[%c0_52, %c0_53] : memref<8x128xf32, #tpu.memory_space<vmem>>, vector<8x128xf32>
    tpu.vector_store %arg5[%c0_52, %c0_53], %259 {strides = array<i32>} : memref<8x128xf32, #tpu.memory_space<vmem>>, vector<8x128xf32>,
    %c0_i32_54 = arith.constant 0 : i32
    %261 = arith.cmpi eq, %arg1, %c0_i32_54 : i32
    %262 = arith.extui %261 : i1 to i32
    %c0_i32_55 = arith.constant 0 : i32
    %263 = arith.cmpi ne, %262, %c0_i32_55 : i32
    scf.if %263 {
      %c0_56 = arith.constant 0 : index
      %c0_57 = arith.constant 0 : index
      %264 = vector.load %arg5[%c0_56, %c0_57] : memref<8x128xf32, #tpu.memory_space<vmem>>, vector<8x128xf32>
      %cst_58 = arith.constant dense<0.000000e+00> : vector<8xf32>
      %265 = vector.multi_reduction <add>, %264, %cst_58 [1] : vector<8x128xf32> to vector<8xf32>
      %266 = vector.shape_cast %265 : vector<8xf32> to vector<8x1xf32>
      %cst_59 = arith.constant dense<0.000000e+00> : vector<1xf32>
      %267 = vector.multi_reduction <add>, %266, %cst_59 [0] : vector<8x1xf32> to vector<1xf32>
      %268 = vector.shape_cast %267 : vector<1xf32> to vector<1x1xf32>
      %cst_60 = arith.constant 5.000000e-01 : f32
      %269 = vector.broadcast %cst_60 : f32 to vector<1x1xf32>
      %270 = arith.mulf %268, %269 : vector<1x1xf32>
      %271 = vector.shape_cast %270 : vector<1x1xf32> to vector<1x1x1xf32>
      %c0_61 = arith.constant 0 : index
      %c0_62 = arith.constant 0 : index
      %c0_63 = arith.constant 0 : index
      %272 = vector.load %arg4[%c0_61, %c0_62, %c0_63] : memref<1x1x1xf32, #tpu.memory_space<vmem>>, vector<1x1x1xf32>
      tpu.vector_store %arg4[%c0_61, %c0_62, %c0_63], %271 {strides = array<i32>} : memref<1x1x1xf32, #tpu.memory_space<vmem>>, vector<1x1x1xf32>,
    } else {
    }
    return
  }
  func.func @transform_0(%arg0: i32, %arg1: i32) -> (i32, i32, i32) {
    %c1_i32 = arith.constant 1 : i32
    %0 = arith.muli %arg0, %c1_i32 : i32
    %1 = arith.addi %0, %arg1 : i32
    %c0_i32 = arith.constant 0 : i32
    %c0_i32_0 = arith.constant 0 : i32
    %c0_i32_1 = arith.constant 0 : i32
    return %c0_i32, %1, %c0_i32_0 : i32, i32, i32
  }
  func.func @transform_1(%arg0: i32, %arg1: i32) -> (i32, i32, i32) {
    %c1_i32 = arith.constant 1 : i32
    %0 = arith.muli %arg0, %c1_i32 : i32
    %1 = arith.addi %0, %arg1 : i32
    %c0_i32 = arith.constant 0 : i32
    %c0_i32_0 = arith.constant 0 : i32
    %c0_i32_1 = arith.constant 0 : i32
    return %c0_i32, %1, %c0_i32_0 : i32, i32, i32
  }
  func.func @transform_2(%arg0: i32, %arg1: i32) -> (i32, i32, i32) {
    %c0_i32 = arith.constant 0 : i32
    %c0_i32_0 = arith.constant 0 : i32
    %c0_i32_1 = arith.constant 0 : i32
    return %arg0, %c0_i32, %c0_i32_0 : i32, i32, i32
  }
}

</mosaic_0001>

<llo_original>
// kernel: tpu_custom_call.1
$region0: #{tpu_custom_call.1}
  #allocation0 [shape = 'u32[]', space=smem, size = 0x4, offset = 0x4, fixed_abs, tag = 'smem constant byte address 0x4 - core index']
  #allocation1 [shape = 'u32[144,128]{1,0:T(1,128)}', space=vmem, size = 0x12000, scoped, tag = 'internal scratch']
  #allocation2 [shape = 'f32[8,128]{1,0:T(8,128)}', space=vmem, size = 0x1000, scoped, tag = 'scratch operand']
  %s0 = inlined_call_operand.hbm [shape: f32[30,8,128], index: 0, kind: input, shape index: {}]
  %s1 = inlined_call_operand.hbm [shape: f32[30,8,128], index: 1, kind: input, shape index: {}]
  %s2 = inlined_call_operand.hbm [shape: f32[1,1,1], index: 2, kind: output, shape index: {}]
  %s3 = sld [smem:[#allocation0]]
  $region34: #{tpu_custom_call.1} parent=0
    _
  %s5 = ssub.s32 1, %s3
  %s6 = scalar_select 0, %s5, %s3
  $region1: #{tpu_custom_call.1} parent=0
    #allocation3 [shape = 'u8[122880]{0}', space=vmem, size = 0x1e000, scoped, tag = 'input window, operand 0, single buffered']
    #allocation4 [shape = 's32[1]{0}', space=sflag, size = 0x4, scoped, tag = 'scoped memory for tpu_custom_call.1']
    #allocation5 [shape = 's32[1]{0}', space=sflag, size = 0x4, scoped, tag = 'scoped memory for tpu_custom_call.1']
    #allocation6 [shape = 'u8[122880]{0}', space=vmem, size = 0x1e000, scoped, tag = 'input window, operand 1, single buffered']
    #allocation7 [shape = 's32[1]{0}', space=sflag, size = 0x4, scoped, tag = 'scoped memory for tpu_custom_call.1']
    #allocation8 [shape = 'u8[512]{0}', space=vmem, size = 0x400, scoped, tag = 'output window, operand 0, single buffered']
    %7 = vsyncpa [#allocation4], 0
    %8 = vsyncpa [#allocation7], 0
    %9 = vsyncpa [#allocation5], 0
    // Predicated region
    $region2: #{tpu_custom_call.1} parent=1 // pred_check
      _
    $region3: #{tpu_custom_call.1} parent=1 // pred_check_branch
      %11 = sbr.rel (0) target = $region5
    $region4: #{tpu_custom_call.1} parent=1 // pred_region
      %s12 = sadd.s32 0, 0
      %s14 = ssub.s32 3840, 3840
      %15 = vsyncadd [#allocation4], %s14
      %s16 = smul.addr %s12, 128
      %s17 = scalar_lea.hbm %s0, %s16
      %s18 = sshll.u32 [#allocation3], 4
      %s19 = int_to_ptr.vmem [resolvable:$true] %s18
      %24 = dma.hbm_to_vmem [thread:$0]  %s17, 3840, %s19, [#allocation4], 128, 128, 8
    $region5: #{tpu_custom_call.1} parent=1 // pred_fallthru
      _
    // Predicated region
    $region6: #{tpu_custom_call.1} parent=1 // pred_check
      _
    $region7: #{tpu_custom_call.1} parent=1 // pred_check_branch
      %26 = sbr.rel (0) target = $region9
    $region8: #{tpu_custom_call.1} parent=1 // pred_region
      %s27 = sadd.s32 0, 0
      %s29 = ssub.s32 3840, 3840
      %30 = vsyncadd [#allocation7], %s29
      %s31 = smul.addr %s27, 128
      %s32 = scalar_lea.hbm %s1, %s31
      %s33 = sshll.u32 [#allocation6], 4
      %s34 = int_to_ptr.vmem [resolvable:$true] %s33
      %39 = dma.hbm_to_vmem [thread:$0]  %s32, 3840, %s34, [#allocation7], 128, 128, 8
    $region9: #{tpu_custom_call.1} parent=1 // pred_fallthru
      _
    // Predicated region
    $region10: #{tpu_custom_call.1} parent=1 // pred_check
      _
    $region11: #{tpu_custom_call.1} parent=1 // pred_check_branch
      %41 = sbr.rel (0) target = $region13
    $region12: #{tpu_custom_call.1} parent=1 // pred_region
      %42 = dma.done [#allocation4], 3840
    $region13: #{tpu_custom_call.1} parent=1 // pred_fallthru
      _
    // Predicated region
    $region14: #{tpu_custom_call.1} parent=1 // pred_check
      _
    $region15: #{tpu_custom_call.1} parent=1 // pred_check_branch
      %44 = sbr.rel (0) target = $region17
    $region16: #{tpu_custom_call.1} parent=1 // pred_region
      %45 = dma.done [#allocation7], 3840
    $region17: #{tpu_custom_call.1} parent=1 // pred_fallthru
      _
    %s46 = sadd.s32 0, 0
    %s47 = sadd.s32 0, 0
    %p48 = scmp.eq.s32.totalorder 0, 0
    // Predicated region
    $region18: #{tpu_custom_call.1} parent=1 // pred_check
      %p49 = pneg %p48
    $region19: #{tpu_custom_call.1} parent=1 // pred_check_branch
      %51 = sbr.rel (%p49) target = $region21
    $region20: #{tpu_custom_call.1} parent=1 // pred_region
      %52 = vst [vmem:[#allocation2] sm:$0xff] 0.0
    $region21: #{tpu_custom_call.1} parent=1 // pred_fallthru
      _
    %v53 = vld [vmem:[#allocation3] sm:$0xff]
    %v54 = vld [vmem:[#allocation3 + $0x8] sm:$0xff]
    %v55 = vld [vmem:[#allocation3 + $0x10] sm:$0xff]
    %v56 = vld [vmem:[#allocation3 + $0x18] sm:$0xff]
    %v57 = vld [vmem:[#allocation3 + $0x20] sm:$0xff]
    %v58 = vld [vmem:[#allocation3 + $0x28] sm:$0xff]
    %v59 = vld [vmem:[#allocation3 + $0x30] sm:$0xff]
    %v60 = vld [vmem:[#allocation3 + $0x38] sm:$0xff]
    %v61 = vld [vmem:[#allocation3 + $0x40] sm:$0xff]
    %v62 = vld [vmem:[#allocation3 + $0x48] sm:$0xff]
    %v63 = vld [vmem:[#allocation3 + $0x50] sm:$0xff]
    %v64 = vld [vmem:[#allocation3 + $0x58] sm:$0xff]
    %v65 = vld [vmem:[#allocation3 + $0x60] sm:$0xff]
    %v66 = vld [vmem:[#allocation3 + $0x68] sm:$0xff]
    %v67 = vld [vmem:[#allocation3 + $0x70] sm:$0xff]
    %v68 = vld [vmem:[#allocation3 + $0x78] sm:$0xff]
    %v69 = vld [vmem:[#allocation3 + $0x80] sm:$0xff]
    %v70 = vld [vmem:[#allocation3 + $0x88] sm:$0xff]
    %v71 = vld [vmem:[#allocation3 + $0x90] sm:$0xff]
    %v72 = vld [vmem:[#allocation3 + $0x98] sm:$0xff]
    %v73 = vld [vmem:[#allocation3 + $0xa0] sm:$0xff]
    %v74 = vld [vmem:[#allocation3 + $0xa8] sm:$0xff]
    %v75 = vld [vmem:[#allocation3 + $0xb0] sm:$0xff]
    %v76 = vld [vmem:[#allocation3 + $0xb8] sm:$0xff]
    %v77 = vld [vmem:[#allocation3 + $0xc0] sm:$0xff]
    %v78 = vld [vmem:[#allocation3 + $0xc8] sm:$0xff]
    %v79 = vld [vmem:[#allocation3 + $0xd0] sm:$0xff]
    %v80 = vld [vmem:[#allocation3 + $0xd8] sm:$0xff]
    %v81 = vld [vmem:[#allocation3 + $0xe0] sm:$0xff]
    %v82 = vld [vmem:[#allocation3 + $0xe8] sm:$0xff]
    %v83 = vld [vmem:[#allocation6] sm:$0xff]
    %v84 = vld [vmem:[#allocation6 + $0x8] sm:$0xff]
    %v85 = vld [vmem:[#allocation6 + $0x10] sm:$0xff]
    %v86 = vld [vmem:[#allocation6 + $0x18] sm:$0xff]
    %v87 = vld [vmem:[#allocation6 + $0x20] sm:$0xff]
    %v88 = vld [vmem:[#allocation6 + $0x28] sm:$0xff]
    %v89 = vld [vmem:[#allocation6 + $0x30] sm:$0xff]
    %v90 = vld [vmem:[#allocation6 + $0x38] sm:$0xff]
    %v91 = vld [vmem:[#allocation6 + $0x40] sm:$0xff]
    %v92 = vld [vmem:[#allocation6 + $0x48] sm:$0xff]
    %v93 = vld [vmem:[#allocation6 + $0x50] sm:$0xff]
    %v94 = vld [vmem:[#allocation6 + $0x58] sm:$0xff]
    %v95 = vld [vmem:[#allocation6 + $0x60] sm:$0xff]
    %v96 = vld [vmem:[#allocation6 + $0x68] sm:$0xff]
    %v97 = vld [vmem:[#allocation6 + $0x70] sm:$0xff]
    %v98 = vld [vmem:[#allocation6 + $0x78] sm:$0xff]
    %v99 = vld [vmem:[#allocation6 + $0x80] sm:$0xff]
    %v100 = vld [vmem:[#allocation6 + $0x88] sm:$0xff]
    %v101 = vld [vmem:[#allocation6 + $0x90] sm:$0xff]
    %v102 = vld [vmem:[#allocation6 + $0x98] sm:$0xff]
    %v103 = vld [vmem:[#allocation6 + $0xa0] sm:$0xff]
    %v104 = vld [vmem:[#allocation6 + $0xa8] sm:$0xff]
    %v105 = vld [vmem:[#allocation6 + $0xb0] sm:$0xff]
    %v106 = vld [vmem:[#allocation6 + $0xb8] sm:$0xff]
    %v107 = vld [vmem:[#allocation6 + $0xc0] sm:$0xff]
    %v108 = vld [vmem:[#allocation6 + $0xc8] sm:$0xff]
    %v109 = vld [vmem:[#allocation6 + $0xd0] sm:$0xff]
    %v110 = vld [vmem:[#allocation6 + $0xd8] sm:$0xff]
    %v111 = vld [vmem:[#allocation6 + $0xe0] sm:$0xff]
    %v112 = vld [vmem:[#allocation6 + $0xe8] sm:$0xff]
    %v113 = vld [vmem:[#allocation2] sm:$0xff]
    %vm114 = vcmp.gt.f32.partialorder %v87, 0.0
    %vm115 = vcmp.eq.f32.partialorder %v87, 0.0
    %v116 = vsub.f32 %v57, %v87
    %v117 = vmul.f32 %v116, %v116
    %v118 = vsub.f32 %v62, %v92
    %v119 = vmul.f32 %v118, %v118
    %v120 = vadd.f32 %v117, %v119
    %v121 = vsel %vm115, %v120, 0.0
    %v122 = vsub.f32 %v63, %v93
    %v123 = vsub.f32 %v64, %v94
    %v124 = vsub.f32 %v65, %v95
    %v125 = vsub.f32 %v66, %v96
    %v126 = vsub.f32 %v67, %v97
    %v127 = vsub.f32 %v68, %v98
    %v128 = vsub.f32 %v69, %v99
    %v129 = vsub.f32 %v70, %v100
    %v130 = vsub.f32 %v71, %v101
    %v131 = vsub.f32 %v72, %v102
    %v132 = vsub.f32 %v73, %v103
    %v133 = vsub.f32 %v74, %v104
    %v134 = vsub.f32 %v75, %v105
    %v135 = vsub.f32 %v76, %v106
    %v136 = vsub.f32 %v77, %v107
    %v137 = vsub.f32 %v78, %v108
    %v138 = vsub.f32 %v79, %v109
    %v139 = vsub.f32 %v80, %v110
    %v140 = vsub.f32 %v81, %v111
    %v141 = vsub.f32 %v82, %v112
    %v142 = vmul.f32 %v122, %v122
    %v143 = vmul.f32 %v123, %v123
    %v144 = vmul.f32 %v124, %v124
    %v145 = vmul.f32 %v125, %v125
    %v146 = vmul.f32 %v126, %v126
    %v147 = vmul.f32 %v127, %v127
    %v148 = vmul.f32 %v128, %v128
    %v149 = vmul.f32 %v129, %v129
    %v150 = vmul.f32 %v130, %v130
    %v151 = vmul.f32 %v131, %v131
    %v152 = vmul.f32 %v132, %v132
    %v153 = vmul.f32 %v133, %v133
    %v154 = vmul.f32 %v134, %v134
    %v155 = vmul.f32 %v135, %v135
    %v156 = vmul.f32 %v136, %v136
    %v157 = vmul.f32 %v137, %v137
    %v158 = vmul.f32 %v138, %v138
    %v159 = vmul.f32 %v139, %v139
    %v160 = vmul.f32 %v140, %v140
    %v161 = vmul.f32 %v141, %v141
    %v162 = vadd.f32 %v142, %v143
    %v163 = vadd.f32 %v162, %v144
    %v164 = vadd.f32 %v163, %v145
    %v165 = vadd.f32 %v164, %v146
    %v166 = vadd.f32 %v165, %v147
    %v167 = vadd.f32 %v166, %v148
    %v168 = vadd.f32 %v167, %v149
    %v169 = vadd.f32 %v168, %v150
    %v170 = vadd.f32 %v169, %v151
    %v171 = vadd.f32 %v170, %v152
    %v172 = vadd.f32 %v171, %v153
    %v173 = vadd.f32 %v172, %v154
    %v174 = vadd.f32 %v173, %v155
    %v175 = vadd.f32 %v174, %v156
    %v176 = vadd.f32 %v175, %v157
    %v177 = vadd.f32 %v176, %v158
    %v178 = vadd.f32 %v177, %v159
    %v179 = vadd.f32 %v178, %v160
    %v180 = vadd.f32 %v179, %v161
    %v181 = vsel %vm114, %v180, 0.0
    %v182 = vmul.f32 %v83, 0.071428575
    %v183 = vmul.f32 %v85, 0.5
    %v184 = vsub.f32 %v182, %v183
    %v185 = vmul.f32 %v84, 0.071428575
    %v186 = vmul.f32 %v86, 0.5
    %v187 = vsub.f32 %v185, %v186
    %v188 = vadd.f32 %v182, %v183
    %v189 = vadd.f32 %v185, %v186
    %v190 = vsub.f32 %v188, %v184
    %v191 = vsub.f32 %v189, %v187
    %v192 = vmul.f32 %v190, %v191
    %v193 = vmul.f32 %v53, 0.071428575
    %v194 = vmul.f32 %v55, 0.5
    %v195 = vsub.f32 %v193, %v194
    %v196 = vmul.f32 %v54, 0.071428575
    %v197 = vmul.f32 %v56, 0.5
    %v198 = vsub.f32 %v196, %v197
    %v199 = vadd.f32 %v193, %v194
    %v200 = vadd.f32 %v196, %v197
    %v201 = vmin.f32 %v199, %v188
    %v202 = vmax.f32 %v195, %v184
    %v203 = vsub.f32 %v201, %v202
    %v204 = vmax.f32 %v203, 0.0
    %v205 = vmin.f32 %v200, %v189
    %v206 = vmax.f32 %v198, %v187
    %v207 = vsub.f32 %v205, %v206
    %v208 = vmax.f32 %v207, 0.0
    %v209 = vmul.f32 %v204, %v208
    %v210 = vsub.f32 %v199, %v195
    %v211 = vsub.f32 %v200, %v198
    %v212 = vmul.f32 %v210, %v211
    %v213 = vadd.f32 %v212, %v192
    %v214 = vsub.f32 %v213, %v209
    %vm215 = vcmp.gt.f32.partialorder %v214, 0.0
    %v216 = vsel %vm215, %v214, 1.0
    %v217 = vrcp.pop %v216
    %v218 = vmul.f32 %v216, %v217
    %v219 = vsub.f32 2.0, %v218
    %v220 = vmul.f32 %v217, %v219
    %v221 = vmul.f32 %v209, %v220
    %v222 = vmul.f32 %v58, 0.071428575
    %v223 = vmul.f32 %v60, 0.5
    %v224 = vsub.f32 %v222, %v223
    %v225 = vmul.f32 %v59, 0.071428575
    %v226 = vmul.f32 %v61, 0.5
    %v227 = vsub.f32 %v225, %v226
    %v228 = vadd.f32 %v222, %v223
    %v229 = vadd.f32 %v225, %v226
    %v230 = vmin.f32 %v228, %v188
    %v231 = vmax.f32 %v224, %v184
    %v232 = vsub.f32 %v230, %v231
    %v233 = vmax.f32 %v232, 0.0
    %v234 = vmin.f32 %v229, %v189
    %v235 = vmax.f32 %v227, %v187
    %v236 = vsub.f32 %v234, %v235
    %v237 = vmax.f32 %v236, 0.0
    %v238 = vmul.f32 %v233, %v237
    %v239 = vsub.f32 %v228, %v224
    %v240 = vsub.f32 %v229, %v227
    %v241 = vmul.f32 %v239, %v240
    %v242 = vadd.f32 %v241, %v192
    %v243 = vsub.f32 %v242, %v238
    %vm244 = vcmp.gt.f32.partialorder %v243, 0.0
    %v245 = vsel %vm244, %v243, 1.0
    %v246 = vrcp.pop %v245
    %v247 = vmul.f32 %v245, %v246
    %v248 = vsub.f32 2.0, %v247
    %v249 = vmul.f32 %v246, %v248
    %v250 = vmul.f32 %v238, %v249
    %vm251 = vcmp.gt.f32.partialorder %v250, %v221
    %v252 = vmax.f32 %v221, %v250
    %v253 = vsel %vm251, %v58, %v53
    %v254 = vsel %vm251, %v59, %v54
    %v255 = vsel %vm251, %v60, %v55
    %v256 = vsel %vm251, %v61, %v56
    %v257 = vsel %vm251, %v62, %v57
    %v258 = vsel %vm251, %v88, %v83
    %v259 = vsel %vm251, %v89, %v84
    %v260 = vsel %vm251, %v90, %v85
    %v261 = vsel %vm251, %v91, %v86
    %v262 = vsel %vm251, %v57, %v62
    %v263 = vsub.f32 %v257, %v252
    %v264 = vmul.f32 %v263, %v263
    %v265 = vsel %vm114, %v264, 0.0
    %v266 = vsub.f32 %v253, %v258
    %v267 = vmul.f32 %v266, %v266
    %v268 = vsub.f32 %v254, %v259
    %v269 = vmul.f32 %v268, %v268
    %v270 = vadd.f32 %v267, %v269
    %v271 = vrsqrt.pop %v255
    %v272 = vmul.f32 %v255, %v271
    %vm273 = vcmp.eq.f32.partialorder %v255, inf
    %v274 = vsel %vm273, %v255, %v272
    %vm275 = vcmp.eq.f32.partialorder %v255, 0.0
    %v276 = vand.u32 %v255, 2147483648
    %v277 = vsel %vm275, %v276, %v274
    %v278 = vrsqrt.pop %v260
    %v279 = vmul.f32 %v260, %v278
    %vm280 = vcmp.eq.f32.partialorder %v260, inf
    %v281 = vsel %vm280, %v260, %v279
    %vm282 = vcmp.eq.f32.partialorder %v260, 0.0
    %v283 = vand.u32 %v260, 2147483648
    %v284 = vsel %vm282, %v283, %v281
    %v285 = vsub.f32 %v277, %v284
    %v286 = vmul.f32 %v285, %v285
    %v287 = vadd.f32 %v270, %v286
    %v288 = vrsqrt.pop %v256
    %v289 = vmul.f32 %v256, %v288
    %vm290 = vcmp.eq.f32.partialorder %v256, inf
    %v291 = vsel %vm290, %v256, %v289
    %vm292 = vcmp.eq.f32.partialorder %v256, 0.0
    %v293 = vand.u32 %v256, 2147483648
    %v294 = vsel %vm292, %v293, %v291
    %v295 = vrsqrt.pop %v261
    %v296 = vmul.f32 %v261, %v295
    %vm297 = vcmp.eq.f32.partialorder %v261, inf
    %v298 = vsel %vm297, %v261, %v296
    %vm299 = vcmp.eq.f32.partialorder %v261, 0.0
    %v300 = vand.u32 %v261, 2147483648
    %v301 = vsel %vm299, %v300, %v298
    %v302 = vsub.f32 %v294, %v301
    %v303 = vmul.f32 %v302, %v302
    %v304 = vadd.f32 %v287, %v303
    %v305 = vsel %vm114, %v304, 0.0
    %v306 = vmul.f32 %v262, %v262
    %v307 = vsel %vm114, %v306, 0.0
    %v308 = vmul.f32 %v305, 5.0
    %v309 = vmul.f32 %v265, 2.0
    %v310 = vadd.f32 %v308, %v309
    %v311 = vadd.f32 %v310, %v307
    %v312 = vmul.f32 %v121, 0.5
    %v313 = vadd.f32 %v311, %v312
    %v314 = vadd.f32 %v313, %v181
    %v315 = vadd.f32 %v113, %v314
    %316 = vst [vmem:[#allocation2] sm:$0xff] %v315
    // Predicated region
    $region22: #{tpu_custom_call.1} parent=1 // pred_check
      %p317 = pneg %p48
    $region23: #{tpu_custom_call.1} parent=1 // pred_check_branch
      %319 = sbr.rel (%p317) target = $region25
    $region24: #{tpu_custom_call.1} parent=1 // pred_region
      %v320 = vld [vmem:[#allocation2] sm:$0xff]
      %321 = vadd.xlane.f32.xlu0 %v320
      %v322 = vpop.xlane.xlu0 %321
      %v323 = vrot.slane %v322, 4
      %v324 = vadd.f32 %v322, %v323
      %v325 = vrot.slane %v324, 2
      %v326 = vadd.f32 %v324, %v325
      %v327 = vrot.slane %v326, 1
      %v328 = vadd.f32 %v326, %v327
      %v329 = vmul.f32 %v328, 0.5
      %vm330 = vcmask 0
      %331 = vst.msk [vmem:[#allocation8] sm:$0x1] %vm330, %v329
    $region25: #{tpu_custom_call.1} parent=1 // pred_fallthru
      _
    // Predicated region
    $region26: #{tpu_custom_call.1} parent=1 // pred_check
      _
    $region27: #{tpu_custom_call.1} parent=1 // pred_check_branch
      %333 = sbr.rel (0) target = $region29
    $region28: #{tpu_custom_call.1} parent=1 // pred_region
      %s335 = ssub.s32 16, 16
      %336 = vsyncadd [#allocation5], %s335
      %s338 = sshll.u32 [#allocation8], 4
      %s339 = int_to_ptr.vmem [resolvable:$true] %s338
      %341 = dma.vmem_to_hbm [thread:$0]  %s339, 16, %s2, [#allocation5]
    $region29: #{tpu_custom_call.1} parent=1 // pred_fallthru
      _
    // Predicated region
    $region30: #{tpu_custom_call.1} parent=1 // pred_check
      _
    $region31: #{tpu_custom_call.1} parent=1 // pred_check_branch
      %343 = sbr.rel (0) target = $region33
    $region32: #{tpu_custom_call.1} parent=1 // pred_region
      %344 = dma.done [#allocation5], 16
    $region33: #{tpu_custom_call.1} parent=1 // pred_fallthru
      _
    %345 = vsyncpa [#allocation4], 1
    %346 = vsyncpa [#allocation7], 1
    %347 = vsyncpa [#allocation5], 1

</llo_original>
